<compile_context>
chip_gen: v7x
topology: tpu7x:2x2x1
jax: 0.10.0
libtpu: 0.0.40
codegen_flags: <defaults>
</compile_context>

<pallas_src>
import jax
import jax.numpy as jnp
from jax import lax
from jax.experimental import pallas as pl
from jax.experimental.pallas import tpu as pltpu

LN_EPS = 1e-5


def _bert_embedding_kernel(seq_ids_ref, mkt_ids_ref,     # SMEM scalar prefetch (N_pad,)
                           tok_hbm, mkt_hbm,             # HBM tables (V,E), (M+1,E)
                           gamma_ref, beta_ref,          # VMEM (1, E)
                           out_ref,                      # VMEM (TL, E)
                           tok_buf, mkt_buf, sems):      # VMEM scratch + DMA sems
    TL, E = out_ref.shape
    V = tok_hbm.shape[0]
    M1 = mkt_hbm.shape[0]
    base = pl.program_id(0) * TL

    # Issue one row-gather DMA per token for each table.  Ids are clamped so a
    # bad id can never read outside the table in HBM.
    @pl.loop(0, TL)
    def _issue(t):
        tok = jnp.clip(seq_ids_ref[base + t], 0, V - 1)
        mkt = jnp.clip(mkt_ids_ref[base + t], 0, M1 - 1)
        pltpu.make_async_copy(tok_hbm.at[pl.ds(tok, 1), :],
                              tok_buf.at[pl.ds(t, 1), :], sems.at[0]).start()
        pltpu.make_async_copy(mkt_hbm.at[pl.ds(mkt, 1), :],
                              mkt_buf.at[pl.ds(t, 1), :], sems.at[1]).start()

    # Drain: one wait per issued copy.  All copies of a table share one DMA
    # semaphore and have identical size, so the waits are interchangeable;
    # after this loop every gather has landed.
    @pl.loop(0, TL)
    def _drain(t):
        pltpu.make_async_copy(tok_hbm.at[pl.ds(0, 1), :],
                              tok_buf.at[pl.ds(t, 1), :], sems.at[0]).wait()
        pltpu.make_async_copy(mkt_hbm.at[pl.ds(0, 1), :],
                              mkt_buf.at[pl.ds(t, 1), :], sems.at[1]).wait()

    x = tok_buf[...] + mkt_buf[...]                       # (TL, E) f32

    # LayerNorm over E (biased variance, eps inside sqrt), matching
    # torch.nn.LayerNorm(embed_size, eps=1e-5).
    mean = jnp.mean(x, axis=-1, keepdims=True)
    xc = x - mean
    var = jnp.mean(xc * xc, axis=-1, keepdims=True)
    y = xc * lax.rsqrt(var + LN_EPS)
    y = y * gamma_ref[...] + beta_ref[...]                # (1, E) broadcast

    # Dropout: inference-mode identity.
    out_ref[...] = y.astype(out_ref.dtype)


def bert_embedding(sequence, mkts, tok_table, mkt_table, gamma, beta,
                   *, token_tile=128):
    B, L = sequence.shape
    V, E = tok_table.shape
    M1 = mkt_table.shape[0]

    # Flatten tokens and pad to a multiple of the tile size (pad id 0 ==
    # padding_idx; padded rows are computed and sliced off afterwards).
    N = B * L
    TL = token_tile if N >= token_tile else max(8, ((N + 7) // 8) * 8)
    n_tiles = pl.cdiv(N, TL)
    N_pad = n_tiles * TL

    seq_flat = jnp.zeros((N_pad,), jnp.int32).at[:N].set(
        sequence.reshape(-1).astype(jnp.int32))
    mkt_flat = jnp.zeros((N_pad,), jnp.int32).at[:N].set(
        mkts.reshape(-1).astype(jnp.int32))

    gamma2 = gamma.reshape(1, E).astype(jnp.float32)
    beta2 = beta.reshape(1, E).astype(jnp.float32)

    out_flat = pl.pallas_call(
        _bert_embedding_kernel,
        out_shape=jax.ShapeDtypeStruct((N_pad, E), jnp.float32),
        grid_spec=pltpu.PrefetchScalarGridSpec(
            num_scalar_prefetch=2,                 # seq ids, mkt ids -> SMEM
            grid=(n_tiles,),
            in_specs=[
                pl.BlockSpec(memory_space=pl.ANY),                 # token table stays in HBM
                pl.BlockSpec(memory_space=pl.ANY),                 # market table stays in HBM
                pl.BlockSpec((1, E), lambda i, seq, mkt: (0, 0)),  # gamma
                pl.BlockSpec((1, E), lambda i, seq, mkt: (0, 0)),  # beta
            ],
            out_specs=pl.BlockSpec((TL, E), lambda i, seq, mkt: (i, 0)),
            scratch_shapes=[
                pltpu.VMEM((TL, E), jnp.float32),   # gathered token rows
                pltpu.VMEM((TL, E), jnp.float32),   # gathered market rows
                pltpu.SemaphoreType.DMA((2,)),      # one sem per table
            ],
        ),
        compiler_params=pltpu.CompilerParams(
            dimension_semantics=("parallel",)),
    )(seq_flat, mkt_flat,
      tok_table.astype(jnp.float32), mkt_table.astype(jnp.float32),
      gamma2, beta2)

    return out_flat[:N].reshape(B, L, E)


def reference(sequence, mkts, tok_table, mkt_table, gamma, beta):
    x = tok_table[sequence] + mkt_table[mkts]
    mean = jnp.mean(x, axis=-1, keepdims=True)
    var = jnp.mean((x - mean) ** 2, axis=-1, keepdims=True)
    y = (x - mean) / jnp.sqrt(var + LN_EPS)
    return y * gamma + beta


if __name__ == "__main__":
    # Small shapes consistent with the module.
    vocab_size = 64
    embed_size = 32
    max_len = 8
    num_markets = 4
    B, L = 2, max_len

    key = jax.random.PRNGKey(0)
    k_tok, k_mkt, k_seq, k_ids = jax.random.split(key, 4)

    # nn.Embedding default init ~ N(0,1); padding_idx=0 row zeroed.
    tok_table = jax.random.normal(k_tok, (vocab_size, embed_size), jnp.float32)
    tok_table = tok_table.at[0].set(0.0)
    mkt_table = jax.random.normal(k_mkt, (num_markets + 1, embed_size), jnp.float32)
    gamma = jnp.ones((embed_size,), jnp.float32)   # nn.LayerNorm default weight
    beta = jnp.zeros((embed_size,), jnp.float32)   # nn.LayerNorm default bias

    sequence = jax.random.randint(k_seq, (B, L), 0, vocab_size, jnp.int32)
    mkts = jax.random.randint(k_ids, (B, L), 0, num_markets + 1, jnp.int32)

    out = bert_embedding(sequence, mkts, tok_table, mkt_table, gamma, beta)
    out = jax.block_until_ready(out)

    ref = reference(sequence, mkts, tok_table, mkt_table, gamma, beta)
    assert out.shape == (B, L, embed_size)
    assert jnp.allclose(out, ref, atol=1e-5, rtol=1e-5), "mismatch vs reference"

    print("KERNEL_OK")
</pallas_src>

<mosaic_0001>
module attributes {stable_mosaic.version = 11 : i64} {
  func.func @_bert_embedding_kernel(%arg0: i32, %arg1: memref<16xi32, #tpu.memory_space<smem>>, %arg2: memref<16xi32, #tpu.memory_space<smem>>, %arg3: memref<64x32xf32, #tpu.memory_space<any>>, %arg4: memref<5x32xf32, #tpu.memory_space<any>>, %arg5: memref<1x32xf32, #tpu.memory_space<vmem>>, %arg6: memref<1x32xf32, #tpu.memory_space<vmem>>, %arg7: memref<16x32xf32, #tpu.memory_space<vmem>>, %arg8: memref<16x32xf32, #tpu.memory_space<vmem>>, %arg9: memref<16x32xf32, #tpu.memory_space<vmem>>, %arg10: memref<2x!tpu.dma_semaphore, #tpu.memory_space<semaphore_mem>>) attributes {dimension_semantics = [#tpu.dimension_semantics<parallel>], iteration_bounds = array<i64: 1>, scalar_prefetch = 2 : i64, scratch_operands = 3 : i64, tpu.core_type = #tpu.core_type<tc>, window_params = [{}, {}, {pipeline_mode = #tpu.pipeline_mode<synchronous>, transform_indices = @transform_2, window_bounds = array<i64: 1, 32>}, {pipeline_mode = #tpu.pipeline_mode<synchronous>, transform_indices = @transform_3, window_bounds = array<i64: 1, 32>}, {transform_indices = @transform_4, window_bounds = array<i64: 16, 32>}]} {
    %c16_i32 = arith.constant 16 : i32
    %0 = arith.muli %arg0, %c16_i32 : i32
    %c0_i32 = arith.constant 0 : i32
    %c16_i32_0 = arith.constant 16 : i32
    %1 = arith.addi %c0_i32, %c16_i32_0 : i32
    %c1_i32 = arith.constant 1 : i32
    scf.for %arg11 = %c0_i32 to %1 step %c1_i32  : i32 {
      %c1_i32_19 = arith.constant 1 : i32
      %29 = arith.muli %arg11, %c1_i32_19 : i32
      %c0_i32_20 = arith.constant 0 : i32
      %30 = arith.addi %c0_i32_20, %29 : i32
      %31 = arith.addi %0, %30 : i32
      %32 = arith.index_cast %31 : i32 to index
      %33 = memref.load %arg1[%32] : memref<16xi32, #tpu.memory_space<smem>>
      %c0_i32_21 = arith.constant 0 : i32
      %c63_i32 = arith.constant 63 : i32
      %34 = arith.maxsi %c0_i32_21, %33 : i32
      %35 = arith.minsi %c63_i32, %34 : i32
      %36 = arith.addi %0, %30 : i32
      %37 = arith.index_cast %36 : i32 to index
      %38 = memref.load %arg2[%37] : memref<16xi32, #tpu.memory_space<smem>>
      %c0_i32_22 = arith.constant 0 : i32
      %c4_i32 = arith.constant 4 : i32
      %39 = arith.maxsi %c0_i32_22, %38 : i32
      %40 = arith.minsi %c4_i32, %39 : i32
      %c0_i32_23 = arith.constant 0 : i32
      %c0_i32_24 = arith.constant 0 : i32
      %41 = tpu.memref_slice %arg3[%35, %c0_i32_24] : memref<64x32xf32, #tpu.memory_space<any>> -> memref<1x32xf32, #tpu.memory_space<any>>
      %c0_i32_25 = arith.constant 0 : i32
      %42 = tpu.memref_slice %arg8[%30, %c0_i32_25] : memref<16x32xf32, #tpu.memory_space<vmem>> -> memref<1x32xf32, #tpu.memory_space<vmem>>
      %43 = tpu.memref_slice %arg10[%c0_i32_23] : memref<2x!tpu.dma_semaphore, #tpu.memory_space<semaphore_mem>> -> memref<1x!tpu.dma_semaphore, #tpu.memory_space<semaphore_mem>>
      %44 = tpu.memref_squeeze %43 : memref<1x!tpu.dma_semaphore, #tpu.memory_space<semaphore_mem>> -> memref<!tpu.dma_semaphore, #tpu.memory_space<semaphore_mem>>
      tpu.enqueue_dma source(%41 : memref<1x32xf32, #tpu.memory_space<any>>) target(%42 : memref<1x32xf32, #tpu.memory_space<vmem>>) target_semaphore(%44 : memref<!tpu.dma_semaphore, #tpu.memory_space<semaphore_mem>>)
      %c1_i32_26 = arith.constant 1 : i32
      %c0_i32_27 = arith.constant 0 : i32
      %45 = tpu.memref_slice %arg4[%40, %c0_i32_27] : memref<5x32xf32, #tpu.memory_space<any>> -> memref<1x32xf32, #tpu.memory_space<any>>
      %c0_i32_28 = arith.constant 0 : i32
      %46 = tpu.memref_slice %arg9[%30, %c0_i32_28] : memref<16x32xf32, #tpu.memory_space<vmem>> -> memref<1x32xf32, #tpu.memory_space<vmem>>
      %47 = tpu.memref_slice %arg10[%c1_i32_26] : memref<2x!tpu.dma_semaphore, #tpu.memory_space<semaphore_mem>> -> memref<1x!tpu.dma_semaphore, #tpu.memory_space<semaphore_mem>>
      %48 = tpu.memref_squeeze %47 : memref<1x!tpu.dma_semaphore, #tpu.memory_space<semaphore_mem>> -> memref<!tpu.dma_semaphore, #tpu.memory_space<semaphore_mem>>
      tpu.enqueue_dma source(%45 : memref<1x32xf32, #tpu.memory_space<any>>) target(%46 : memref<1x32xf32, #tpu.memory_space<vmem>>) target_semaphore(%48 : memref<!tpu.dma_semaphore, #tpu.memory_space<semaphore_mem>>)
    }
    %c16_i32_1 = arith.constant 16 : i32
    %c0_i32_2 = arith.constant 0 : i32
    %c16_i32_3 = arith.constant 16 : i32
    %2 = arith.addi %c0_i32_2, %c16_i32_3 : i32
    %c1_i32_4 = arith.constant 1 : i32
    scf.for %arg11 = %c0_i32_2 to %2 step %c1_i32_4  : i32 {
      %c1_i32_19 = arith.constant 1 : i32
      %29 = arith.muli %arg11, %c1_i32_19 : i32
      %c0_i32_20 = arith.constant 0 : i32
      %30 = arith.addi %c0_i32_20, %29 : i32
      %c0_i32_21 = arith.constant 0 : i32
      %c0_i32_22 = arith.constant 0 : i32
      %c0_i32_23 = arith.constant 0 : i32
      %31 = tpu.memref_slice %arg3[%c0_i32_22, %c0_i32_23] : memref<64x32xf32, #tpu.memory_space<any>> -> memref<1x32xf32, #tpu.memory_space<any>>
      %c0_i32_24 = arith.constant 0 : i32
      %32 = tpu.memref_slice %arg8[%30, %c0_i32_24] : memref<16x32xf32, #tpu.memory_space<vmem>> -> memref<1x32xf32, #tpu.memory_space<vmem>>
      %33 = tpu.memref_slice %arg10[%c0_i32_21] : memref<2x!tpu.dma_semaphore, #tpu.memory_space<semaphore_mem>> -> memref<1x!tpu.dma_semaphore, #tpu.memory_space<semaphore_mem>>
      %34 = tpu.memref_squeeze %33 : memref<1x!tpu.dma_semaphore, #tpu.memory_space<semaphore_mem>> -> memref<!tpu.dma_semaphore, #tpu.memory_space<semaphore_mem>>
      tpu.wait_dma2 semaphore(%34 : memref<!tpu.dma_semaphore, #tpu.memory_space<semaphore_mem>>) src(%31 : memref<1x32xf32, #tpu.memory_space<any>>) dst(%32 : memref<1x32xf32, #tpu.memory_space<vmem>>)
      %c1_i32_25 = arith.constant 1 : i32
      %c0_i32_26 = arith.constant 0 : i32
      %c0_i32_27 = arith.constant 0 : i32
      %35 = tpu.memref_slice %arg4[%c0_i32_26, %c0_i32_27] : memref<5x32xf32, #tpu.memory_space<any>> -> memref<1x32xf32, #tpu.memory_space<any>>
      %c0_i32_28 = arith.constant 0 : i32
      %36 = tpu.memref_slice %arg9[%30, %c0_i32_28] : memref<16x32xf32, #tpu.memory_space<vmem>> -> memref<1x32xf32, #tpu.memory_space<vmem>>
      %37 = tpu.memref_slice %arg10[%c1_i32_25] : memref<2x!tpu.dma_semaphore, #tpu.memory_space<semaphore_mem>> -> memref<1x!tpu.dma_semaphore, #tpu.memory_space<semaphore_mem>>
      %38 = tpu.memref_squeeze %37 : memref<1x!tpu.dma_semaphore, #tpu.memory_space<semaphore_mem>> -> memref<!tpu.dma_semaphore, #tpu.memory_space<semaphore_mem>>
      tpu.wait_dma2 semaphore(%38 : memref<!tpu.dma_semaphore, #tpu.memory_space<semaphore_mem>>) src(%35 : memref<1x32xf32, #tpu.memory_space<any>>) dst(%36 : memref<1x32xf32, #tpu.memory_space<vmem>>)
    }
    %c16_i32_5 = arith.constant 16 : i32
    %c0 = arith.constant 0 : index
    %c0_6 = arith.constant 0 : index
    %3 = vector.load %arg8[%c0, %c0_6] : memref<16x32xf32, #tpu.memory_space<vmem>>, vector<16x32xf32>
    %c0_7 = arith.constant 0 : index
    %c0_8 = arith.constant 0 : index
    %4 = vector.load %arg9[%c0_7, %c0_8] : memref<16x32xf32, #tpu.memory_space<vmem>>, vector<16x32xf32>
    %5 = arith.addf %3, %4 : vector<16x32xf32>
    %cst = arith.constant dense<0.000000e+00> : vector<16xf32>
    %6 = vector.multi_reduction <add>, %5, %cst [1] : vector<16x32xf32> to vector<16xf32>
    %7 = vector.shape_cast %6 : vector<16xf32> to vector<16x1xf32>
    %cst_9 = arith.constant 3.200000e+01 : f32
    %8 = vector.broadcast %cst_9 : f32 to vector<16x1xf32>
    %9 = arith.divf %7, %8 : vector<16x1xf32>
    %10 = vector.broadcast %9 : vector<16x1xf32> to vector<16x32xf32>
    %11 = arith.subf %5, %10 : vector<16x32xf32>
    %12 = arith.mulf %11, %11 : vector<16x32xf32>
    %cst_10 = arith.constant dense<0.000000e+00> : vector<16xf32>
    %13 = vector.multi_reduction <add>, %12, %cst_10 [1] : vector<16x32xf32> to vector<16xf32>
    %14 = vector.shape_cast %13 : vector<16xf32> to vector<16x1xf32>
    %cst_11 = arith.constant 3.200000e+01 : f32
    %15 = vector.broadcast %cst_11 : f32 to vector<16x1xf32>
    %16 = arith.divf %14, %15 : vector<16x1xf32>
    %cst_12 = arith.constant 9.99999974E-6 : f32
    %17 = vector.broadcast %cst_12 : f32 to vector<16x1xf32>
    %18 = arith.addf %16, %17 : vector<16x1xf32>
    %19 = math.rsqrt %18 : vector<16x1xf32>
    %20 = vector.broadcast %19 : vector<16x1xf32> to vector<16x32xf32>
    %21 = arith.mulf %11, %20 : vector<16x32xf32>
    %c0_13 = arith.constant 0 : index
    %c0_14 = arith.constant 0 : index
    %22 = vector.load %arg5[%c0_13, %c0_14] : memref<1x32xf32, #tpu.memory_space<vmem>>, vector<1x32xf32>
    %23 = vector.broadcast %22 : vector<1x32xf32> to vector<16x32xf32>
    %24 = arith.mulf %21, %23 : vector<16x32xf32>
    %c0_15 = arith.constant 0 : index
    %c0_16 = arith.constant 0 : index
    %25 = vector.load %arg6[%c0_15, %c0_16] : memref<1x32xf32, #tpu.memory_space<vmem>>, vector<1x32xf32>
    %26 = vector.broadcast %25 : vector<1x32xf32> to vector<16x32xf32>
    %27 = arith.addf %24, %26 : vector<16x32xf32>
    %c0_17 = arith.constant 0 : index
    %c0_18 = arith.constant 0 : index
    %28 = vector.load %arg7[%c0_17, %c0_18] : memref<16x32xf32, #tpu.memory_space<vmem>>, vector<16x32xf32>
    tpu.vector_store %arg7[%c0_17, %c0_18], %27 {strides = array<i32>} : memref<16x32xf32, #tpu.memory_space<vmem>>, vector<16x32xf32>,
    return
  }
  func.func @transform_2(%arg0: i32, %arg1: memref<16xi32, #tpu.memory_space<smem>>, %arg2: memref<16xi32, #tpu.memory_space<smem>>) -> (i32, i32) {
    %c0_i32 = arith.constant 0 : i32
    %c0_i32_0 = arith.constant 0 : i32
    %c0_i32_1 = arith.constant 0 : i32
    return %c0_i32, %c0_i32_0 : i32, i32
  }
  func.func @transform_3(%arg0: i32, %arg1: memref<16xi32, #tpu.memory_space<smem>>, %arg2: memref<16xi32, #tpu.memory_space<smem>>) -> (i32, i32) {
    %c0_i32 = arith.constant 0 : i32
    %c0_i32_0 = arith.constant 0 : i32
    %c0_i32_1 = arith.constant 0 : i32
    return %c0_i32, %c0_i32_0 : i32, i32
  }
  func.func @transform_4(%arg0: i32, %arg1: memref<16xi32, #tpu.memory_space<smem>>, %arg2: memref<16xi32, #tpu.memory_space<smem>>) -> (i32, i32) {
    %c0_i32 = arith.constant 0 : i32
    %c0_i32_0 = arith.constant 0 : i32
    return %arg0, %c0_i32 : i32, i32
  }
}

</mosaic_0001>

<llo_original>
// kernel: tpu_custom_call.1
$region0: #{tpu_custom_call.1}
  #allocation0 [shape = 'u32[]', space=smem, size = 0x4, offset = 0x4, fixed_abs, tag = 'smem constant byte address 0x4 - core index']
  #allocation1 [shape = 'u32[144,128]{1,0:T(1,128)}', space=vmem, size = 0x12000, scoped, tag = 'internal scratch']
  #allocation2 [shape = 'f32[16,32]{1,0:T(8,128)}', space=vmem, size = 0x2000, scoped, tag = 'scratch operand']
  #allocation3 [shape = 'f32[16,32]{1,0:T(8,128)}', space=vmem, size = 0x2000, scoped, tag = 'scratch operand']
  #allocation4 [shape = 's32[2]{0}', space=sflag, size = 0x8, scoped, tag = 'scratch operand']
  #allocation5 [shape = 's32[1]{0}', space=sflag, size = 0x4, scoped, tag = 'scoped memory for tpu_custom_call.1']
  #allocation6 [shape = 'u8[512]{0}', space=smem, size = 0x200, scoped, tag = 'prefetched SMEM operand 0']
  #allocation7 [shape = 'u8[512]{0}', space=smem, size = 0x200, scoped, tag = 'prefetched SMEM operand 1']
  #allocation10 [shape = 's32[]', space=sflag, size = 0x4, offset = 0, fixed_abs, tag = 'sflag constant byte address 0x0 - dummy sync flag']
  #allocation11 [shape = 's32[]', space=sflag, size = 0x4, offset = 0, fixed_abs, tag = 'sflag constant byte address 0x0 - dummy sync flag']
  %s0 = inlined_call_operand.vmem [shape: s32[16], index: 0, kind: input, shape index: {}]
  %s1 = inlined_call_operand.vmem [shape: s32[16], index: 1, kind: input, shape index: {}]
  %s2 = inlined_call_operand.vmem [shape: f32[64,32], index: 2, kind: input, shape index: {}]
  %s3 = inlined_call_operand.vmem [shape: f32[5,32], index: 3, kind: input, shape index: {}]
  %s4 = inlined_call_operand.vmem [shape: f32[1,32], index: 4, kind: input, shape index: {}]
  %s5 = inlined_call_operand.vmem [shape: f32[1,32], index: 5, kind: input, shape index: {}]
  %s6 = inlined_call_operand.hbm [shape: f32[16,32], index: 6, kind: output, shape index: {}]
  %s7 = sld [smem:[#allocation0]]
  $region92: #{tpu_custom_call.1} parent=0
    _
  %s9 = ssub.s32 1, %s7
  %s10 = scalar_select 0, %s9, %s7
  %s11 = sshll.u32 %s0, 4
  %s12 = int_to_ptr.vmem [resolvable:$true] %s11
  %14 = dma.vmem_to_smem %s12, 16, [#allocation6], [#allocation5]
  %s15 = sshll.u32 %s1, 4
  %s16 = int_to_ptr.vmem [resolvable:$true] %s15
  %18 = dma.vmem_to_smem %s16, 16, [#allocation7], [#allocation5]
  %19 = dma.done [#allocation5], 32
  %20 = sfence
  $region1: #{tpu_custom_call.1} parent=0
    #allocation8 [shape = 'u8[8192]{0}', space=vmem, size = 0x2000, scoped, tag = 'output window, operand 0, single buffered']
    #allocation9 [shape = 's32[1]{0}', space=sflag, size = 0x4, scoped, tag = 'scoped memory for tpu_custom_call.1']
    %21 = vsyncpa [#allocation9], 0
    // Predicated region
    $region2: #{tpu_custom_call.1} parent=1 // pred_check
      _
    $region3: #{tpu_custom_call.1} parent=1 // pred_check_branch
      %23 = sbr.rel (0) target = $region5
    $region4: #{tpu_custom_call.1} parent=1 // pred_region
      _
    $region5: #{tpu_custom_call.1} parent=1 // pred_fallthru
      _
    // Predicated region
    $region6: #{tpu_custom_call.1} parent=1 // pred_check
      _
    $region7: #{tpu_custom_call.1} parent=1 // pred_check_branch
      %25 = sbr.rel (0) target = $region9
    $region8: #{tpu_custom_call.1} parent=1 // pred_region
      _
    $region9: #{tpu_custom_call.1} parent=1 // pred_fallthru
      _
    %s26 = smul.u32 0, 16
    loop: start=0, step=1, limit=16
    $region10: #{tpu_custom_call.1} parent=1 // loop_pre_header
      _
    $region11: #{tpu_custom_call.1} parent=1 // loop_header
      %s28 = sphi 0, %s32
      %p29 = scmp.ge.s32.totalorder %s28, 16
    $region12: #{tpu_custom_call.1} parent=1 // loop_header_branch
      %31 = sbr.rel (%p29) target = $region16
    $region13: #{tpu_custom_call.1} parent=1 // loop_body
      %s33 = sadd.s32 %s26, %s28
      %s34 = sld [smem:[#allocation6 + %s33]]
      %p35 = scmp.gt.s32.totalorder %s34, 0
      %s36 = scalar_select %p35, %s34, 0
      %p37 = scmp.lt.s32.totalorder %s36, 63
      %s38 = scalar_select %p37, %s36, 63
      %s39 = sld [smem:[#allocation7 + %s33]]
      %p40 = scmp.gt.s32.totalorder %s39, 0
      %s41 = scalar_select %p40, %s39, 0
      %p42 = scmp.lt.s32.totalorder %s41, 4
      %s43 = scalar_select %p42, %s41, 4
      %s44 = scalar_lea.vmem %s2, %s38
      %s45 = scalar_lea.vmem [#allocation2], %s28
      %p47 = scmp.lt.u32.totalorder 1, 8
      %p48 = pneg %p47
      // Predicated region
      $region17: #{tpu_custom_call.1} parent=13 // pred_check
        _
      $region18: #{tpu_custom_call.1} parent=13 // pred_check_branch
        %50 = sbr.rel (%p47) target = $region20
      $region19: #{tpu_custom_call.1} parent=13 // pred_region
        %s65 = sand.u32 1, 7
        %p66 = scmp.eq.s32.totalorder %s65, 0
        %p67 = pneg %p66
        // Predicated region
        $region32: #{tpu_custom_call.1} parent=19 // pred_check
          _
        $region33: #{tpu_custom_call.1} parent=19 // pred_check_branch
          %69 = sbr.rel (%p66) target = $region35
        $region34: #{tpu_custom_call.1} parent=19 // pred_region
          %s70 = sand.u32 1, 7
          %s71 = ssub.s32 1, %s70
          %s72 = scalar_lea.vmem %s44, %s71
          %s73 = ssub.s32 1, %s70
          %s74 = scalar_lea.vmem %s45, %s73 [#allocation2]
          %s75 = sshllo.u32 0, %s70
          loop: start=0, step=1, limit=1
          $region36: #{tpu_custom_call.1} parent=34 // loop_pre_header
            _
          $region37: #{tpu_custom_call.1} parent=34 // loop_header
            %s77 = sphi 0, %s81
            %p78 = scmp.ge.s32.totalorder %s77, 1
            %s82 = sphi %s72, %s72
            %s83 = sphi %s74, %s74
          $region38: #{tpu_custom_call.1} parent=34 // loop_header_branch
            %80 = sbr.rel (%p78) target = $region42
          $region39: #{tpu_custom_call.1} parent=34 // loop_body
            %v84 = vld [vmem:[%s82] sm:%s75]
            %85 = vst [vmem:[%s83] sm:%s75] %v84
          $region40: #{tpu_custom_call.1} parent=34 // loop_footer
            %s81 = sadd.s32 1, %s77
          $region41: #{tpu_custom_call.1} parent=34 // loop_footer_branch
            %76 = sbr.rel target = $region37
          $region42: #{tpu_custom_call.1} parent=34 // loop_exit
            _
        $region35: #{tpu_custom_call.1} parent=19 // pred_fallthru
          _
      $region20: #{tpu_custom_call.1} parent=13 // pred_fallthru
        _
      // Predicated region
      $region21: #{tpu_custom_call.1} parent=13 // pred_check
        %p51 = pneg %p47
      $region22: #{tpu_custom_call.1} parent=13 // pred_check_branch
        %53 = sbr.rel (%p51) target = $region24
      $region23: #{tpu_custom_call.1} parent=13 // pred_region
        %s54 = sshllo.u32 0, 1
        loop: start=0, step=1, limit=1
        $region25: #{tpu_custom_call.1} parent=23 // loop_pre_header
          _
        $region26: #{tpu_custom_call.1} parent=23 // loop_header
          %s56 = sphi 0, %s60
          %p57 = scmp.ge.s32.totalorder %s56, 1
          %s61 = sphi %s44, %s44
          %s62 = sphi %s45, %s45
        $region27: #{tpu_custom_call.1} parent=23 // loop_header_branch
          %59 = sbr.rel (%p57) target = $region31
        $region28: #{tpu_custom_call.1} parent=23 // loop_body
          %v63 = vld [vmem:[%s61] sm:%s54]
          %64 = vst [vmem:[%s62] sm:%s54] %v63
        $region29: #{tpu_custom_call.1} parent=23 // loop_footer
          %s60 = sadd.s32 1, %s56
        $region30: #{tpu_custom_call.1} parent=23 // loop_footer_branch
          %55 = sbr.rel target = $region26
        $region31: #{tpu_custom_call.1} parent=23 // loop_exit
          _
      $region24: #{tpu_custom_call.1} parent=13 // pred_fallthru
        _
      // Predicated region
      $region43: #{tpu_custom_call.1} parent=13 // pred_check
        _
      $region44: #{tpu_custom_call.1} parent=13 // pred_check_branch
        %88 = sbr.rel (0) target = $region46
      $region45: #{tpu_custom_call.1} parent=13 // pred_region
        %89 = vsyncadd [#allocation4], 16
      $region46: #{tpu_custom_call.1} parent=13 // pred_fallthru
        _
      %s90 = scalar_lea.vmem %s3, %s43
      %s91 = scalar_lea.vmem [#allocation3], %s28
      %s92 = scalar_lea.sflag [#allocation4], 1
      %p94 = scmp.lt.u32.totalorder 1, 8
      %p95 = pneg %p94
      // Predicated region
      $region47: #{tpu_custom_call.1} parent=13 // pred_check
        _
      $region48: #{tpu_custom_call.1} parent=13 // pred_check_branch
        %97 = sbr.rel (%p94) target = $region50
      $region49: #{tpu_custom_call.1} parent=13 // pred_region
        %s112 = sand.u32 1, 7
        %p113 = scmp.eq.s32.totalorder %s112, 0
        %p114 = pneg %p113
        // Predicated region
        $region62: #{tpu_custom_call.1} parent=49 // pred_check
          _
        $region63: #{tpu_custom_call.1} parent=49 // pred_check_branch
          %116 = sbr.rel (%p113) target = $region65
        $region64: #{tpu_custom_call.1} parent=49 // pred_region
          %s117 = sand.u32 1, 7
          %s118 = ssub.s32 1, %s117
          %s119 = scalar_lea.vmem %s90, %s118
          %s120 = ssub.s32 1, %s117
          %s121 = scalar_lea.vmem %s91, %s120 [#allocation3]
          %s122 = sshllo.u32 0, %s117
          loop: start=0, step=1, limit=1
          $region66: #{tpu_custom_call.1} parent=64 // loop_pre_header
            _
          $region67: #{tpu_custom_call.1} parent=64 // loop_header
            %s124 = sphi 0, %s128
            %p125 = scmp.ge.s32.totalorder %s124, 1
            %s129 = sphi %s119, %s119
            %s130 = sphi %s121, %s121
          $region68: #{tpu_custom_call.1} parent=64 // loop_header_branch
            %127 = sbr.rel (%p125) target = $region72
          $region69: #{tpu_custom_call.1} parent=64 // loop_body
            %v131 = vld [vmem:[%s129] sm:%s122]
            %132 = vst [vmem:[%s130] sm:%s122] %v131
          $region70: #{tpu_custom_call.1} parent=64 // loop_footer
            %s128 = sadd.s32 1, %s124
          $region71: #{tpu_custom_call.1} parent=64 // loop_footer_branch
            %123 = sbr.rel target = $region67
          $region72: #{tpu_custom_call.1} parent=64 // loop_exit
            _
        $region65: #{tpu_custom_call.1} parent=49 // pred_fallthru
          _
      $region50: #{tpu_custom_call.1} parent=13 // pred_fallthru
        _
      // Predicated region
      $region51: #{tpu_custom_call.1} parent=13 // pred_check
        %p98 = pneg %p94
      $region52: #{tpu_custom_call.1} parent=13 // pred_check_branch
        %100 = sbr.rel (%p98) target = $region54
      $region53: #{tpu_custom_call.1} parent=13 // pred_region
        %s101 = sshllo.u32 0, 1
        loop: start=0, step=1, limit=1
        $region55: #{tpu_custom_call.1} parent=53 // loop_pre_header
          _
        $region56: #{tpu_custom_call.1} parent=53 // loop_header
          %s103 = sphi 0, %s107
          %p104 = scmp.ge.s32.totalorder %s103, 1
          %s108 = sphi %s90, %s90
          %s109 = sphi %s91, %s91
        $region57: #{tpu_custom_call.1} parent=53 // loop_header_branch
          %106 = sbr.rel (%p104) target = $region61
        $region58: #{tpu_custom_call.1} parent=53 // loop_body
          %v110 = vld [vmem:[%s108] sm:%s101]
          %111 = vst [vmem:[%s109] sm:%s101] %v110
        $region59: #{tpu_custom_call.1} parent=53 // loop_footer
          %s107 = sadd.s32 1, %s103
        $region60: #{tpu_custom_call.1} parent=53 // loop_footer_branch
          %102 = sbr.rel target = $region56
        $region61: #{tpu_custom_call.1} parent=53 // loop_exit
          _
      $region54: #{tpu_custom_call.1} parent=13 // pred_fallthru
        _
      // Predicated region
      $region73: #{tpu_custom_call.1} parent=13 // pred_check
        _
      $region74: #{tpu_custom_call.1} parent=13 // pred_check_branch
        %135 = sbr.rel (0) target = $region76
      $region75: #{tpu_custom_call.1} parent=13 // pred_region
        %136 = vsyncadd %s92, 16
      $region76: #{tpu_custom_call.1} parent=13 // pred_fallthru
        _
    $region14: #{tpu_custom_call.1} parent=1 // loop_footer
      %s32 = sadd.s32 1, %s28
    $region15: #{tpu_custom_call.1} parent=1 // loop_footer_branch
      %27 = sbr.rel target = $region11
    $region16: #{tpu_custom_call.1} parent=1 // loop_exit
      _
    loop: start=0, step=1, limit=16
    $region77: #{tpu_custom_call.1} parent=1 // loop_pre_header
      _
    $region78: #{tpu_custom_call.1} parent=1 // loop_header
      %s138 = sphi 0, %s142
      %p139 = scmp.ge.s32.totalorder %s138, 16
    $region79: #{tpu_custom_call.1} parent=1 // loop_header_branch
      %141 = sbr.rel (%p139) target = $region83
    $region80: #{tpu_custom_call.1} parent=1 // loop_body
      %s143 = smul.u32 1, 1
      %s144 = sshll.u32 %s143, 4
      %145 = dma.done [#allocation4], %s144
      %s146 = scalar_lea.sflag [#allocation4], 1
      %s147 = sshll.u32 %s143, 4
      %148 = dma.done %s146, %s147
    $region81: #{tpu_custom_call.1} parent=1 // loop_footer
      %s142 = sadd.s32 1, %s138
    $region82: #{tpu_custom_call.1} parent=1 // loop_footer_branch
      %137 = sbr.rel target = $region78
    $region83: #{tpu_custom_call.1} parent=1 // loop_exit
      _
    %v149 = vld [vmem:[#allocation2] sm:$0xff]
    %v150 = vld [vmem:[#allocation2 + $0x8] sm:$0xff]
    %v151 = vld [vmem:[#allocation3] sm:$0xff]
    %v152 = vld [vmem:[#allocation3 + $0x8] sm:$0xff]
    %v153 = vadd.f32 %v149, %v151
    %v154 = vadd.f32 %v150, %v152
    %vm155 = vcmask 261120
    %v156 = vsel %vm155, %v153, 0.0
    %157 = vadd.xlane.f32.xlu0 %v156
    %v158 = vpop.xlane.xlu0 %157
    %v159 = vsel %vm155, %v154, 0.0
    %160 = vadd.xlane.f32.xlu0 %v159
    %v161 = vpop.xlane.xlu0 %160
    %v162 = vrcp.pop 32.0
    %v163 = vmul.f32 %v158, %v162
    %v164 = vmul.f32 %v161, %v162
    %v165 = vsub.f32 %v153, %v163
    %v166 = vsub.f32 %v154, %v164
    %v167 = vmul.f32 %v165, %v165
    %v168 = vmul.f32 %v166, %v166
    %v169 = vsel %vm155, %v167, 0.0
    %170 = vadd.xlane.f32.xlu0 %v169
    %v171 = vpop.xlane.xlu0 %170
    %v172 = vsel %vm155, %v168, 0.0
    %173 = vadd.xlane.f32.xlu0 %v172
    %v174 = vpop.xlane.xlu0 %173
    %v175 = vmul.f32 %v171, %v162
    %v176 = vmul.f32 %v174, %v162
    %v177 = vadd.f32 %v175, 1e-05
    %v178 = vadd.f32 %v176, 1e-05
    %v179 = vrsqrt.pop %v177
    %v180 = vrsqrt.pop %v178
    %v181 = vmul.f32 %v165, %v179
    %v182 = vmul.f32 %v166, %v180
    %v183 = vld [vmem:[%s4] sm:$0x1]
    %v185 = vlaneseq
    %v186 = vshrl.u32 %v185, 7
    %v187 = vsub.s32 0, %v186
    %v188 = vrot.slane %v183, %v187
    %v190 = vmul.f32 %v181, %v188
    %v191 = vmul.f32 %v182, %v188
    %v192 = vld [vmem:[%s5] sm:$0x1]
    %v194 = vlaneseq
    %v195 = vshrl.u32 %v194, 7
    %v196 = vsub.s32 0, %v195
    %v197 = vrot.slane %v192, %v196
    %v199 = vadd.f32 %v190, %v197
    %v200 = vadd.f32 %v191, %v197
    %201 = vst.msk [vmem:[#allocation8] sm:$0xff] %vm155, %v199
    %202 = vst.msk [vmem:[#allocation8 + $0x8] sm:$0xff] %vm155, %v200
    // Predicated region
    $region84: #{tpu_custom_call.1} parent=1 // pred_check
      _
    $region85: #{tpu_custom_call.1} parent=1 // pred_check_branch
      %204 = sbr.rel (0) target = $region87
    $region86: #{tpu_custom_call.1} parent=1 // pred_region
      %s206 = ssub.s32 256, 256
      %207 = vsyncadd [#allocation9], %s206
      %s208 = sshll.u32 [#allocation8], 4
      %s209 = int_to_ptr.vmem [resolvable:$true] %s208
      %214 = dma.vmem_to_hbm [thread:$0]  %s209, 256, %s6, [#allocation9], 128, 128, 8
    $region87: #{tpu_custom_call.1} parent=1 // pred_fallthru
      _
    // Predicated region
    $region88: #{tpu_custom_call.1} parent=1 // pred_check
      _
    $region89: #{tpu_custom_call.1} parent=1 // pred_check_branch
      %216 = sbr.rel (0) target = $region91
    $region90: #{tpu_custom_call.1} parent=1 // pred_region
      %217 = dma.done [#allocation9], 256
    $region91: #{tpu_custom_call.1} parent=1 // pred_fallthru
      _
    %218 = vsyncpa [#allocation9], 1
  %219 = vsyncmov [#allocation4]
  %s220 = vpop.sfrf %219
  %p221 = scmp.eq.s32.totalorder %s220, 0
  %p222 = pneg %p221
  %224 = shalt.err (%p222)
  %s225 = scalar_lea.sflag [#allocation4], 1
  %226 = vsyncmov %s225
  %s227 = vpop.sfrf %226
  %p228 = scmp.eq.s32.totalorder %s227, 0
  %p229 = pneg %p228
  %231 = shalt.err (%p229)

</llo_original>
